<compile_context>
chip_gen: v5e
topology: v5e:2x2
jax: 0.10.0
libtpu: 0.0.40
codegen_flags: <defaults>
</compile_context>

<pallas_src>
import jax
import jax.numpy as jnp
from jax.experimental import pallas as pl
from jax.experimental.pallas import tpu as pltpu


# ----------------------------------------------------------------------------
# Helpers
# ----------------------------------------------------------------------------
def _layernorm(x, w, b, eps=1e-5):
    # x: (T, D) f32; w, b: (1, D) f32
    mean = jnp.mean(x, axis=-1, keepdims=True)
    var = jnp.mean((x - mean) ** 2, axis=-1, keepdims=True)
    return (x - mean) * jax.lax.rsqrt(var + eps) * w + b


def _weight_spec():
    # Grid-invariant operand: single VMEM-resident copy, no double-buffering.
    return pl.BlockSpec(memory_space=pltpu.MemorySpace.VMEM)


def _nbytes(*arrays):
    return sum(int(a.size) * a.dtype.itemsize for a in arrays)


def _device_vmem_budget():
    # Per-generation VMEM cap: 128 MiB on v5e/v6e, 64 MiB on v7x.
    try:
        cap = int(pltpu.get_tpu_info().vmem_capacity_bytes)
    except Exception:
        cap = 64 << 20                      # conservative fallback (v7x-sized)
    return max(16 << 20, cap - (8 << 20))   # leave compiler headroom


def _vmem_limit(static_bytes, per_step_block_bytes):
    need = static_bytes + 2 * per_step_block_bytes + (4 << 20)
    return int(min(_device_vmem_budget(), max(32 << 20, need)))


def _pick_tile(total, preferred):
    for t in preferred:
        if t <= total and total % t == 0:
            return t
    return total


def _pick_seq_tile(total, batch):
    # Cap at 128 when the VMEM budget is v7x-sized; prefer >= 2 T-tiles at
    # B == 1 so the (B, n_t) parallel grid can shard across both v7x cores.
    cap = 256 if _device_vmem_budget() >= (96 << 20) else 128
    cands = [t for t in (256, 128, 64, 32, 16, 8)
             if t <= cap and t <= total and total % t == 0]
    if not cands:
        return total
    if batch == 1:
        for t in cands:
            if total // t >= 2:
                return t
    return cands[0]


# ----------------------------------------------------------------------------
# Kernel 1: fused QKV projection, head-major outputs, q pre-scaled.
# ----------------------------------------------------------------------------
def qkv_proj_kernel(x_ref, wqkv_ref, bqkv_ref, q_ref, k_ref, v_ref):
    # x: (TT, D) f32; wqkv: (D, 3D) bf16; bqkv: (1, 3D) f32
    # q/k/v out: (H, TT, hd) bf16
    H, _, hd = q_ref.shape
    D = H * hd
    scale = 1.0 / (hd ** 0.5)
    x = x_ref[...].astype(jnp.bfloat16)
    qkv = jnp.dot(x, wqkv_ref[...], preferred_element_type=jnp.float32)
    qkv = qkv + bqkv_ref[...]
    for h in range(H):                          # unrolled layout plumbing
        q_ref[h] = (qkv[:, h * hd:(h + 1) * hd] * scale).astype(q_ref.dtype)
        k_ref[h] = qkv[:, D + h * hd:D + (h + 1) * hd].astype(k_ref.dtype)
        v_ref[h] = qkv[:, 2 * D + h * hd:2 * D + (h + 1) * hd].astype(v_ref.dtype)


# ----------------------------------------------------------------------------
# Kernel 2: flash attention over a KV grid axis + out-proj + LN1 + FFN + LN2.
# ----------------------------------------------------------------------------
def block_body_kernel(x_ref, q_ref, k_ref, v_ref,
                      wo_ref, bo_ref, ln1w_ref, ln1b_ref,
                      wff1_ref, bff1_ref, wff2_ref, bff2_ref,
                      ln2w_ref, ln2b_ref, out_ref,
                      m_sc, l_sc, acc_sc, ctx_sc):
    kv = pl.program_id(2)
    n_kv = pl.num_programs(2)

    @pl.when(kv == 0)
    def _():
        m_sc[...] = jnp.full(m_sc.shape, -jnp.inf, m_sc.dtype)
        l_sc[...] = jnp.zeros(l_sc.shape, l_sc.dtype)
        acc_sc[...] = jnp.zeros(acc_sc.shape, acc_sc.dtype)

    q = q_ref[...]                               # (H, TT, hd) bf16, pre-scaled
    k = k_ref[...]                               # (H, TK, hd) bf16
    v = v_ref[...]                               # (H, TK, hd) bf16

    # Head-batched scores (H, TT, TK), f32 accumulation on the MXU.
    s = jax.lax.dot_general(q, k, (((2,), (2,)), ((0,), (0,))),
                            preferred_element_type=jnp.float32)

    m_prev = m_sc[...]
    m_new = jnp.maximum(m_prev, jnp.max(s, axis=-1, keepdims=True))
    alpha = jnp.exp(m_prev - m_new)
    p = jnp.exp(s - m_new)
    l_sc[...] = alpha * l_sc[...] + jnp.sum(p, axis=-1, keepdims=True)
    acc_sc[...] = alpha * acc_sc[...] + jax.lax.dot_general(
        p.astype(jnp.bfloat16), v, (((2,), (1,)), ((0,), (0,))),
        preferred_element_type=jnp.float32)
    m_sc[...] = m_new

    @pl.when(kv == n_kv - 1)
    def _():
        H, _, hd = acc_sc.shape
        # Normalize; route the divide to the EUP via approx reciprocal.
        ctx = acc_sc[...] * pl.reciprocal(l_sc[...], approx=True)   # (H, TT, hd) f32
        ctx = ctx.astype(jnp.bfloat16)
        # Head-major -> feature-major layout via per-head column stores, so the
        # output projection is a single K=D matmul (full MXU fill).
        for h in range(H):
            ctx_sc[:, h * hd:(h + 1) * hd] = ctx[h]
        attn = jnp.dot(ctx_sc[...], wo_ref[...],
                       preferred_element_type=jnp.float32) + bo_ref[...]

        x = x_ref[...]                                   # (TT, D) f32 residual
        x1 = _layernorm(x + attn, ln1w_ref[...], ln1b_ref[...])

        # Feed-forward (bf16 MXU operands, f32 accumulation).
        # TODO(synk): at production sizes (D>=1024, F>=4096) wff1/wff2 should be
        # K/N-tiled instead of held fully VMEM-resident.
        h1 = jnp.dot(x1.astype(jnp.bfloat16), wff1_ref[...],
                     preferred_element_type=jnp.float32) + bff1_ref[...]
        h1 = jax.nn.gelu(h1, approximate=True)
        ff = jnp.dot(h1.astype(jnp.bfloat16), wff2_ref[...],
                     preferred_element_type=jnp.float32) + bff2_ref[...]
        x2 = _layernorm(x1 + ff, ln2w_ref[...], ln2b_ref[...])
        out_ref[...] = x2.astype(out_ref.dtype)


# ----------------------------------------------------------------------------
# Kernel 3a: final LayerNorm (computed once, bf16 output feeds the LM head).
# ----------------------------------------------------------------------------
def final_ln_kernel(x_ref, w_ref, b_ref, o_ref):
    o_ref[...] = _layernorm(x_ref[...], w_ref[...], b_ref[...]).astype(o_ref.dtype)


# ----------------------------------------------------------------------------
# Kernel 3b: tied-weight LM head, pure matmul over D (untransposed (V, D) table).
# ----------------------------------------------------------------------------
def head_kernel(xn_ref, emb_ref, out_ref):
    # xn: (TT, D) bf16; emb: (TV, D) bf16
    out_ref[...] = jax.lax.dot_general(
        xn_ref[...], emb_ref[...], (((1,), (1,)), ((), ())),
        preferred_element_type=jnp.float32).astype(out_ref.dtype)


# ----------------------------------------------------------------------------
# Wrappers
# ----------------------------------------------------------------------------
def run_transformer_block(x, p, num_heads):
    B, T, D = x.shape
    H = num_heads
    hd = D // H
    F = p["wff1"].shape[1]
    tt = _pick_seq_tile(T, B)
    tk = _pick_tile(T, (512, 256, 128, 64, 32, 16, 8))
    n_t, n_kv = T // tt, T // tk

    # ---- QKV projection: grid (B, T-tiles), head-major bf16 outputs --------
    qkv_static = _nbytes(p["wqkv"], p["bqkv"]) + tt * 3 * D * 6   # weights + qkv f32 + bf16 x
    qkv_step = tt * D * 4 + 3 * tt * D * 2                        # x tile + 3 out tiles
    q, k, v = pl.pallas_call(
        qkv_proj_kernel,
        out_shape=tuple(jax.ShapeDtypeStruct((B, H, T, hd), jnp.bfloat16)
                        for _ in range(3)),
        grid=(B, n_t),
        in_specs=[pl.BlockSpec((None, tt, D), lambda b, t: (b, t, 0)),
                  _weight_spec(), _weight_spec()],
        out_specs=tuple(pl.BlockSpec((None, H, tt, hd), lambda b, t: (b, 0, t, 0))
                        for _ in range(3)),
        compiler_params=pltpu.CompilerParams(
            dimension_semantics=("parallel", "parallel"),
            vmem_limit_bytes=_vmem_limit(qkv_static, qkv_step)),
    )(x, p["wqkv"], p["bqkv"])

    # ---- Attention + MLP block: grid (B, T-tiles, KV-tiles) -----------------
    weights = [p["wo"], p["bo"], p["ln1w"], p["ln1b"],
               p["wff1"], p["bff1"], p["wff2"], p["bff2"],
               p["ln2w"], p["ln2b"]]
    scratch = [pltpu.VMEM((H, tt, 1), jnp.float32),     # m (running max)
               pltpu.VMEM((H, tt, 1), jnp.float32),     # l (running denom)
               pltpu.VMEM((H, tt, hd), jnp.float32),    # acc (context)
               pltpu.VMEM((tt, D), jnp.bfloat16)]       # feature-major context
    blk_static = (_nbytes(*weights)
                  + (2 * H * tt + tt * D) * 4 + tt * D * 2   # scratch
                  + H * tt * tk * 6                          # s (f32) + p (bf16)
                  + tt * F * 8                               # h1 + gelu temp
                  + 6 * tt * D * 4)                          # attn/x1/ff/x2 temps
    blk_step = 2 * tt * D * 4 + tt * D * 2 + 2 * tk * D * 2  # x,out f32 + q,k,v bf16

    return pl.pallas_call(
        block_body_kernel,
        out_shape=jax.ShapeDtypeStruct((B, T, D), jnp.float32),
        grid=(B, n_t, n_kv),
        in_specs=[pl.BlockSpec((None, tt, D), lambda b, t, kv: (b, t, 0)),       # x tile
                  pl.BlockSpec((None, H, tt, hd), lambda b, t, kv: (b, 0, t, 0)),  # q tile
                  pl.BlockSpec((None, H, tk, hd), lambda b, t, kv: (b, 0, kv, 0)), # k tile
                  pl.BlockSpec((None, H, tk, hd), lambda b, t, kv: (b, 0, kv, 0))] # v tile
                 + [_weight_spec() for _ in weights],
        out_specs=pl.BlockSpec((None, tt, D), lambda b, t, kv: (b, t, 0)),
        scratch_shapes=scratch,
        compiler_params=pltpu.CompilerParams(
            dimension_semantics=("parallel", "parallel", "arbitrary"),
            vmem_limit_bytes=_vmem_limit(blk_static, blk_step)),
    )(x, q, k, v, *weights)


def run_final_ln(x, w, b):
    B, T, D = x.shape
    tt = _pick_seq_tile(T, B)
    step = tt * D * 4 + tt * D * 2
    return pl.pallas_call(
        final_ln_kernel,
        out_shape=jax.ShapeDtypeStruct((B, T, D), jnp.bfloat16),
        grid=(B, T // tt),
        in_specs=[pl.BlockSpec((None, tt, D), lambda b, t: (b, t, 0)),
                  _weight_spec(), _weight_spec()],
        out_specs=pl.BlockSpec((None, tt, D), lambda b, t: (b, t, 0)),
        compiler_params=pltpu.CompilerParams(
            dimension_semantics=("parallel", "parallel"),
            vmem_limit_bytes=_vmem_limit(_nbytes(w, b) + tt * D * 8, step)),
    )(x, w, b)


def run_head(x_ln, emb_bf16):
    B, T, D = x_ln.shape
    V = emb_bf16.shape[0]
    tt = _pick_seq_tile(T, B)
    tv = _pick_tile(V, (2048, 1024, 512, 256, 128))
    n_t, n_v = T // tt, V // tv
    step = tt * D * 2 + tv * D * 2 + tt * tv * 4
    # Grid ordered (B, n_v, n_t): the (tv, D) embedding tile index is constant
    # across the innermost T axis, so it is fetched once per vocab tile instead
    # of once per (b, t) pair.
    return pl.pallas_call(
        head_kernel,
        out_shape=jax.ShapeDtypeStruct((B, T, V), jnp.float32),
        grid=(B, n_v, n_t),
        in_specs=[pl.BlockSpec((None, tt, D), lambda b, vi, t: (b, t, 0)),
                  pl.BlockSpec((tv, D), lambda b, vi, t: (vi, 0))],
        out_specs=pl.BlockSpec((None, tt, tv), lambda b, vi, t: (b, t, vi)),
        compiler_params=pltpu.CompilerParams(
            dimension_semantics=("parallel", "parallel", "parallel"),
            vmem_limit_bytes=_vmem_limit(tt * tv * 4, step)),
    )(x_ln, emb_bf16)


# ----------------------------------------------------------------------------
# Deterministic parameter construction
# ----------------------------------------------------------------------------
def init_params(key, vocab_size, embed_dim, ff_dim, num_layers, max_seq_len):
    keys = iter(jax.random.split(key, 4 + num_layers * 6))

    def nrm(k, shape, std=0.02):
        # matmul weights in bf16 (MXU operands); biases / LN params stay f32
        return (std * jax.random.normal(k, shape)).astype(jnp.bfloat16)

    params = {
        "tok_emb": nrm(next(keys), (vocab_size, embed_dim)),
        "pos_emb": nrm(next(keys), (max_seq_len, embed_dim)),
        "lnf_w": jnp.ones((1, embed_dim), jnp.float32),
        "lnf_b": jnp.zeros((1, embed_dim), jnp.float32),
        "blocks": [],
    }
    for _ in range(num_layers):
        blk = {
            # all matrices stored (in, out) so kernels compute x @ W
            "wqkv": nrm(next(keys), (embed_dim, 3 * embed_dim)),
            "bqkv": jnp.zeros((1, 3 * embed_dim), jnp.float32),
            "wo":   nrm(next(keys), (embed_dim, embed_dim)),
            "bo":   jnp.zeros((1, embed_dim), jnp.float32),
            "ln1w": jnp.ones((1, embed_dim), jnp.float32),
            "ln1b": jnp.zeros((1, embed_dim), jnp.float32),
            "wff1": nrm(next(keys), (embed_dim, ff_dim)),
            "bff1": jnp.zeros((1, ff_dim), jnp.float32),
            "wff2": nrm(next(keys), (ff_dim, embed_dim)),
            "bff2": jnp.zeros((1, embed_dim), jnp.float32),
            "ln2w": jnp.ones((1, embed_dim), jnp.float32),
            "ln2b": jnp.zeros((1, embed_dim), jnp.float32),
        }
        _ = next(keys)   # keep key consumption stable across layer counts
        params["blocks"].append(blk)
    return params


def minigpt_forward(idx, params, num_heads):
    B, T = idx.shape
    # Embedding gather (glue, plain JAX): tok_emb + pos_emb, f32 residual stream.
    tok = jnp.take(params["tok_emb"], idx, axis=0).astype(jnp.float32)   # (B, T, D)
    pos = params["pos_emb"][:T].astype(jnp.float32)[None]                # (1, T, D)
    x = tok + pos

    for blk in params["blocks"]:
        x = run_transformer_block(x, blk, num_heads)

    # head.weight tied to token_embedding.weight; the head kernel contracts
    # over D directly against the untransposed (V, D) table.
    x_ln = run_final_ln(x, params["lnf_w"], params["lnf_b"])
    return run_head(x_ln, params["tok_emb"])


# ----------------------------------------------------------------------------
if __name__ == "__main__":
    vocab_size, embed_dim, num_heads, ff_dim, num_layers, max_seq_len = 64, 32, 4, 64, 2, 16
    B, T = 2, 8

    key = jax.random.PRNGKey(0)
    k_idx, k_params = jax.random.split(key)

    idx = jax.random.randint(k_idx, (B, T), 0, vocab_size, dtype=jnp.int32)
    params = init_params(k_params, vocab_size, embed_dim, ff_dim, num_layers, max_seq_len)

    logits = minigpt_forward(idx, params, num_heads)
    jax.block_until_ready(logits)

    assert logits.shape == (B, T, vocab_size), logits.shape
    assert logits.dtype == jnp.float32
    assert bool(jnp.all(jnp.isfinite(logits)))
    print("KERNEL_OK")
</pallas_src>

<mosaic_0001>
module attributes {stable_mosaic.version = 11 : i64} {
  func.func @qkv_proj_kernel(%arg0: i32, %arg1: i32, %arg2: memref<1x8x32xf32, #tpu.memory_space<vmem>>, %arg3: memref<32x96xbf16, #tpu.memory_space<vmem>>, %arg4: memref<1x96xf32, #tpu.memory_space<vmem>>, %arg5: memref<1x4x8x8xbf16, #tpu.memory_space<vmem>>, %arg6: memref<1x4x8x8xbf16, #tpu.memory_space<vmem>>, %arg7: memref<1x4x8x8xbf16, #tpu.memory_space<vmem>>) attributes {dimension_semantics = [#tpu.dimension_semantics<parallel>, #tpu.dimension_semantics<parallel>], iteration_bounds = array<i64: 2, 1>, scalar_prefetch = 0 : i64, scratch_operands = 0 : i64, tpu.core_type = #tpu.core_type<tc>, window_params = [{transform_indices = @transform_0, window_bounds = array<i64: 1, 8, 32>}, {pipeline_mode = #tpu.pipeline_mode<synchronous>, transform_indices = @transform_1, window_bounds = array<i64: 32, 96>}, {pipeline_mode = #tpu.pipeline_mode<synchronous>, transform_indices = @transform_2, window_bounds = array<i64: 1, 96>}, {transform_indices = @transform_3, window_bounds = array<i64: 1, 4, 8, 8>}, {transform_indices = @transform_4, window_bounds = array<i64: 1, 4, 8, 8>}, {transform_indices = @transform_5, window_bounds = array<i64: 1, 4, 8, 8>}]} {
    %c0 = arith.constant 0 : index
    %c0_0 = arith.constant 0 : index
    %c0_1 = arith.constant 0 : index
    %0 = vector.load %arg2[%c0, %c0_0, %c0_1] : memref<1x8x32xf32, #tpu.memory_space<vmem>>, vector<1x8x32xf32>
    %1 = vector.shape_cast %0 : vector<1x8x32xf32> to vector<8x32xf32>
    %2 = arith.truncf %1 : vector<8x32xf32> to vector<8x32xbf16>
    %c0_2 = arith.constant 0 : index
    %c0_3 = arith.constant 0 : index
    %3 = vector.load %arg3[%c0_2, %c0_3] : memref<32x96xbf16, #tpu.memory_space<vmem>>, vector<32x96xbf16>
    %cst = arith.constant dense<0.000000e+00> : vector<8x96xf32>
    %4 = tpu.matmul %2, %3, %cst {dimension_numbers = #tpu.dot_dimension_numbers<[1], [0], [0], [1], [0, 0, 1, 1], [], []>} : vector<8x32xbf16>, vector<32x96xbf16>, vector<8x96xf32> -> vector<8x96xf32>
    %c0_4 = arith.constant 0 : index
    %c0_5 = arith.constant 0 : index
    %5 = vector.load %arg4[%c0_4, %c0_5] : memref<1x96xf32, #tpu.memory_space<vmem>>, vector<1x96xf32>
    %6 = vector.broadcast %5 : vector<1x96xf32> to vector<8x96xf32>
    %7 = arith.addf %4, %6 : vector<8x96xf32>
    %8 = vector.extract_strided_slice %7 {offsets = [0, 0], sizes = [8, 8], strides = [1, 1]} : vector<8x96xf32> to vector<8x8xf32>
    %cst_6 = arith.constant 0.353553385 : f32
    %9 = vector.broadcast %cst_6 : f32 to vector<8x8xf32>
    %10 = arith.mulf %8, %9 : vector<8x8xf32>
    %11 = arith.truncf %10 : vector<8x8xf32> to vector<8x8xbf16>
    %c0_7 = arith.constant 0 : index
    %c0_8 = arith.constant 0 : index
    %c0_9 = arith.constant 0 : index
    %c0_10 = arith.constant 0 : index
    %12 = vector.load %arg5[%c0_7, %c0_8, %c0_9, %c0_10] : memref<1x4x8x8xbf16, #tpu.memory_space<vmem>>, vector<1x1x8x8xbf16>
    %13 = vector.shape_cast %12 : vector<1x1x8x8xbf16> to vector<8x8xbf16>
    %14 = vector.shape_cast %11 : vector<8x8xbf16> to vector<1x1x8x8xbf16>
    tpu.vector_store %arg5[%c0_7, %c0_8, %c0_9, %c0_10], %14 {strides = array<i32>} : memref<1x4x8x8xbf16, #tpu.memory_space<vmem>>, vector<1x1x8x8xbf16>,
    %15 = vector.extract_strided_slice %7 {offsets = [0, 32], sizes = [8, 8], strides = [1, 1]} : vector<8x96xf32> to vector<8x8xf32>
    %16 = arith.truncf %15 : vector<8x8xf32> to vector<8x8xbf16>
    %c0_11 = arith.constant 0 : index
    %c0_12 = arith.constant 0 : index
    %c0_13 = arith.constant 0 : index
    %c0_14 = arith.constant 0 : index
    %17 = vector.load %arg6[%c0_11, %c0_12, %c0_13, %c0_14] : memref<1x4x8x8xbf16, #tpu.memory_space<vmem>>, vector<1x1x8x8xbf16>
    %18 = vector.shape_cast %17 : vector<1x1x8x8xbf16> to vector<8x8xbf16>
    %19 = vector.shape_cast %16 : vector<8x8xbf16> to vector<1x1x8x8xbf16>
    tpu.vector_store %arg6[%c0_11, %c0_12, %c0_13, %c0_14], %19 {strides = array<i32>} : memref<1x4x8x8xbf16, #tpu.memory_space<vmem>>, vector<1x1x8x8xbf16>,
    %20 = vector.extract_strided_slice %7 {offsets = [0, 64], sizes = [8, 8], strides = [1, 1]} : vector<8x96xf32> to vector<8x8xf32>
    %21 = arith.truncf %20 : vector<8x8xf32> to vector<8x8xbf16>
    %c0_15 = arith.constant 0 : index
    %c0_16 = arith.constant 0 : index
    %c0_17 = arith.constant 0 : index
    %c0_18 = arith.constant 0 : index
    %22 = vector.load %arg7[%c0_15, %c0_16, %c0_17, %c0_18] : memref<1x4x8x8xbf16, #tpu.memory_space<vmem>>, vector<1x1x8x8xbf16>
    %23 = vector.shape_cast %22 : vector<1x1x8x8xbf16> to vector<8x8xbf16>
    %24 = vector.shape_cast %21 : vector<8x8xbf16> to vector<1x1x8x8xbf16>
    tpu.vector_store %arg7[%c0_15, %c0_16, %c0_17, %c0_18], %24 {strides = array<i32>} : memref<1x4x8x8xbf16, #tpu.memory_space<vmem>>, vector<1x1x8x8xbf16>,
    %25 = vector.extract_strided_slice %7 {offsets = [0, 8], sizes = [8, 8], strides = [1, 1]} : vector<8x96xf32> to vector<8x8xf32>
    %cst_19 = arith.constant 0.353553385 : f32
    %26 = vector.broadcast %cst_19 : f32 to vector<8x8xf32>
    %27 = arith.mulf %25, %26 : vector<8x8xf32>
    %28 = arith.truncf %27 : vector<8x8xf32> to vector<8x8xbf16>
    %c0_20 = arith.constant 0 : index
    %c1 = arith.constant 1 : index
    %c0_21 = arith.constant 0 : index
    %c0_22 = arith.constant 0 : index
    %29 = vector.load %arg5[%c0_20, %c1, %c0_21, %c0_22] : memref<1x4x8x8xbf16, #tpu.memory_space<vmem>>, vector<1x1x8x8xbf16>
    %30 = vector.shape_cast %29 : vector<1x1x8x8xbf16> to vector<8x8xbf16>
    %31 = vector.shape_cast %28 : vector<8x8xbf16> to vector<1x1x8x8xbf16>
    tpu.vector_store %arg5[%c0_20, %c1, %c0_21, %c0_22], %31 {strides = array<i32>} : memref<1x4x8x8xbf16, #tpu.memory_space<vmem>>, vector<1x1x8x8xbf16>,
    %32 = vector.extract_strided_slice %7 {offsets = [0, 40], sizes = [8, 8], strides = [1, 1]} : vector<8x96xf32> to vector<8x8xf32>
    %33 = arith.truncf %32 : vector<8x8xf32> to vector<8x8xbf16>
    %c0_23 = arith.constant 0 : index
    %c1_24 = arith.constant 1 : index
    %c0_25 = arith.constant 0 : index
    %c0_26 = arith.constant 0 : index
    %34 = vector.load %arg6[%c0_23, %c1_24, %c0_25, %c0_26] : memref<1x4x8x8xbf16, #tpu.memory_space<vmem>>, vector<1x1x8x8xbf16>
    %35 = vector.shape_cast %34 : vector<1x1x8x8xbf16> to vector<8x8xbf16>
    %36 = vector.shape_cast %33 : vector<8x8xbf16> to vector<1x1x8x8xbf16>
    tpu.vector_store %arg6[%c0_23, %c1_24, %c0_25, %c0_26], %36 {strides = array<i32>} : memref<1x4x8x8xbf16, #tpu.memory_space<vmem>>, vector<1x1x8x8xbf16>,
    %37 = vector.extract_strided_slice %7 {offsets = [0, 72], sizes = [8, 8], strides = [1, 1]} : vector<8x96xf32> to vector<8x8xf32>
    %38 = arith.truncf %37 : vector<8x8xf32> to vector<8x8xbf16>
    %c0_27 = arith.constant 0 : index
    %c1_28 = arith.constant 1 : index
    %c0_29 = arith.constant 0 : index
    %c0_30 = arith.constant 0 : index
    %39 = vector.load %arg7[%c0_27, %c1_28, %c0_29, %c0_30] : memref<1x4x8x8xbf16, #tpu.memory_space<vmem>>, vector<1x1x8x8xbf16>
    %40 = vector.shape_cast %39 : vector<1x1x8x8xbf16> to vector<8x8xbf16>
    %41 = vector.shape_cast %38 : vector<8x8xbf16> to vector<1x1x8x8xbf16>
    tpu.vector_store %arg7[%c0_27, %c1_28, %c0_29, %c0_30], %41 {strides = array<i32>} : memref<1x4x8x8xbf16, #tpu.memory_space<vmem>>, vector<1x1x8x8xbf16>,
    %42 = vector.extract_strided_slice %7 {offsets = [0, 16], sizes = [8, 8], strides = [1, 1]} : vector<8x96xf32> to vector<8x8xf32>
    %cst_31 = arith.constant 0.353553385 : f32
    %43 = vector.broadcast %cst_31 : f32 to vector<8x8xf32>
    %44 = arith.mulf %42, %43 : vector<8x8xf32>
    %45 = arith.truncf %44 : vector<8x8xf32> to vector<8x8xbf16>
    %c0_32 = arith.constant 0 : index
    %c2 = arith.constant 2 : index
    %c0_33 = arith.constant 0 : index
    %c0_34 = arith.constant 0 : index
    %46 = vector.load %arg5[%c0_32, %c2, %c0_33, %c0_34] : memref<1x4x8x8xbf16, #tpu.memory_space<vmem>>, vector<1x1x8x8xbf16>
    %47 = vector.shape_cast %46 : vector<1x1x8x8xbf16> to vector<8x8xbf16>
    %48 = vector.shape_cast %45 : vector<8x8xbf16> to vector<1x1x8x8xbf16>
    tpu.vector_store %arg5[%c0_32, %c2, %c0_33, %c0_34], %48 {strides = array<i32>} : memref<1x4x8x8xbf16, #tpu.memory_space<vmem>>, vector<1x1x8x8xbf16>,
    %49 = vector.extract_strided_slice %7 {offsets = [0, 48], sizes = [8, 8], strides = [1, 1]} : vector<8x96xf32> to vector<8x8xf32>
    %50 = arith.truncf %49 : vector<8x8xf32> to vector<8x8xbf16>
    %c0_35 = arith.constant 0 : index
    %c2_36 = arith.constant 2 : index
    %c0_37 = arith.constant 0 : index
    %c0_38 = arith.constant 0 : index
    %51 = vector.load %arg6[%c0_35, %c2_36, %c0_37, %c0_38] : memref<1x4x8x8xbf16, #tpu.memory_space<vmem>>, vector<1x1x8x8xbf16>
    %52 = vector.shape_cast %51 : vector<1x1x8x8xbf16> to vector<8x8xbf16>
    %53 = vector.shape_cast %50 : vector<8x8xbf16> to vector<1x1x8x8xbf16>
    tpu.vector_store %arg6[%c0_35, %c2_36, %c0_37, %c0_38], %53 {strides = array<i32>} : memref<1x4x8x8xbf16, #tpu.memory_space<vmem>>, vector<1x1x8x8xbf16>,
    %54 = vector.extract_strided_slice %7 {offsets = [0, 80], sizes = [8, 8], strides = [1, 1]} : vector<8x96xf32> to vector<8x8xf32>
    %55 = arith.truncf %54 : vector<8x8xf32> to vector<8x8xbf16>
    %c0_39 = arith.constant 0 : index
    %c2_40 = arith.constant 2 : index
    %c0_41 = arith.constant 0 : index
    %c0_42 = arith.constant 0 : index
    %56 = vector.load %arg7[%c0_39, %c2_40, %c0_41, %c0_42] : memref<1x4x8x8xbf16, #tpu.memory_space<vmem>>, vector<1x1x8x8xbf16>
    %57 = vector.shape_cast %56 : vector<1x1x8x8xbf16> to vector<8x8xbf16>
    %58 = vector.shape_cast %55 : vector<8x8xbf16> to vector<1x1x8x8xbf16>
    tpu.vector_store %arg7[%c0_39, %c2_40, %c0_41, %c0_42], %58 {strides = array<i32>} : memref<1x4x8x8xbf16, #tpu.memory_space<vmem>>, vector<1x1x8x8xbf16>,
    %59 = vector.extract_strided_slice %7 {offsets = [0, 24], sizes = [8, 8], strides = [1, 1]} : vector<8x96xf32> to vector<8x8xf32>
    %cst_43 = arith.constant 0.353553385 : f32
    %60 = vector.broadcast %cst_43 : f32 to vector<8x8xf32>
    %61 = arith.mulf %59, %60 : vector<8x8xf32>
    %62 = arith.truncf %61 : vector<8x8xf32> to vector<8x8xbf16>
    %c0_44 = arith.constant 0 : index
    %c3 = arith.constant 3 : index
    %c0_45 = arith.constant 0 : index
    %c0_46 = arith.constant 0 : index
    %63 = vector.load %arg5[%c0_44, %c3, %c0_45, %c0_46] : memref<1x4x8x8xbf16, #tpu.memory_space<vmem>>, vector<1x1x8x8xbf16>
    %64 = vector.shape_cast %63 : vector<1x1x8x8xbf16> to vector<8x8xbf16>
    %65 = vector.shape_cast %62 : vector<8x8xbf16> to vector<1x1x8x8xbf16>
    tpu.vector_store %arg5[%c0_44, %c3, %c0_45, %c0_46], %65 {strides = array<i32>} : memref<1x4x8x8xbf16, #tpu.memory_space<vmem>>, vector<1x1x8x8xbf16>,
    %66 = vector.extract_strided_slice %7 {offsets = [0, 56], sizes = [8, 8], strides = [1, 1]} : vector<8x96xf32> to vector<8x8xf32>
    %67 = arith.truncf %66 : vector<8x8xf32> to vector<8x8xbf16>
    %c0_47 = arith.constant 0 : index
    %c3_48 = arith.constant 3 : index
    %c0_49 = arith.constant 0 : index
    %c0_50 = arith.constant 0 : index
    %68 = vector.load %arg6[%c0_47, %c3_48, %c0_49, %c0_50] : memref<1x4x8x8xbf16, #tpu.memory_space<vmem>>, vector<1x1x8x8xbf16>
    %69 = vector.shape_cast %68 : vector<1x1x8x8xbf16> to vector<8x8xbf16>
    %70 = vector.shape_cast %67 : vector<8x8xbf16> to vector<1x1x8x8xbf16>
    tpu.vector_store %arg6[%c0_47, %c3_48, %c0_49, %c0_50], %70 {strides = array<i32>} : memref<1x4x8x8xbf16, #tpu.memory_space<vmem>>, vector<1x1x8x8xbf16>,
    %71 = vector.extract_strided_slice %7 {offsets = [0, 88], sizes = [8, 8], strides = [1, 1]} : vector<8x96xf32> to vector<8x8xf32>
    %72 = arith.truncf %71 : vector<8x8xf32> to vector<8x8xbf16>
    %c0_51 = arith.constant 0 : index
    %c3_52 = arith.constant 3 : index
    %c0_53 = arith.constant 0 : index
    %c0_54 = arith.constant 0 : index
    %73 = vector.load %arg7[%c0_51, %c3_52, %c0_53, %c0_54] : memref<1x4x8x8xbf16, #tpu.memory_space<vmem>>, vector<1x1x8x8xbf16>
    %74 = vector.shape_cast %73 : vector<1x1x8x8xbf16> to vector<8x8xbf16>
    %75 = vector.shape_cast %72 : vector<8x8xbf16> to vector<1x1x8x8xbf16>
    tpu.vector_store %arg7[%c0_51, %c3_52, %c0_53, %c0_54], %75 {strides = array<i32>} : memref<1x4x8x8xbf16, #tpu.memory_space<vmem>>, vector<1x1x8x8xbf16>,
    return
  }
  func.func @transform_0(%arg0: i32, %arg1: i32) -> (i32, i32, i32) {
    %c0_i32 = arith.constant 0 : i32
    %c0_i32_0 = arith.constant 0 : i32
    return %arg0, %arg1, %c0_i32 : i32, i32, i32
  }
  func.func @transform_1(%arg0: i32, %arg1: i32) -> (i32, i32) {
    %c0_i32 = arith.constant 0 : i32
    %c0_i32_0 = arith.constant 0 : i32
    %c0_i32_1 = arith.constant 0 : i32
    return %c0_i32, %c0_i32_0 : i32, i32
  }
  func.func @transform_2(%arg0: i32, %arg1: i32) -> (i32, i32) {
    %c0_i32 = arith.constant 0 : i32
    %c0_i32_0 = arith.constant 0 : i32
    %c0_i32_1 = arith.constant 0 : i32
    return %c0_i32, %c0_i32_0 : i32, i32
  }
  func.func @transform_3(%arg0: i32, %arg1: i32) -> (i32, i32, i32, i32) {
    %c0_i32 = arith.constant 0 : i32
    %c0_i32_0 = arith.constant 0 : i32
    %c0_i32_1 = arith.constant 0 : i32
    return %arg0, %c0_i32, %arg1, %c0_i32_0 : i32, i32, i32, i32
  }
  func.func @transform_4(%arg0: i32, %arg1: i32) -> (i32, i32, i32, i32) {
    %c0_i32 = arith.constant 0 : i32
    %c0_i32_0 = arith.constant 0 : i32
    %c0_i32_1 = arith.constant 0 : i32
    return %arg0, %c0_i32, %arg1, %c0_i32_0 : i32, i32, i32, i32
  }
  func.func @transform_5(%arg0: i32, %arg1: i32) -> (i32, i32, i32, i32) {
    %c0_i32 = arith.constant 0 : i32
    %c0_i32_0 = arith.constant 0 : i32
    %c0_i32_1 = arith.constant 0 : i32
    return %arg0, %c0_i32, %arg1, %c0_i32_0 : i32, i32, i32, i32
  }
}

</mosaic_0001>

<llo_original>
// kernel: tpu_custom_call.1
$region0: #{tpu_custom_call.1}
  #allocation0 [shape = 'u32[]', space=smem, size = 0x4, offset = 0x4, fixed_abs, tag = 'smem constant byte address 0x4 - core index']
  #allocation1 [shape = 'u32[72,128]{1,0:T(1,128)}', space=vmem, size = 0x9000, scoped, tag = 'internal scratch']
  %s0 = inlined_call_operand.hbm [shape: f32[2,8,32], index: 0, kind: input, shape index: {}]
  %s1 = inlined_call_operand.hbm [shape: bf16[32,96], index: 1, kind: input, shape index: {}]
  %s2 = inlined_call_operand.vmem [shape: f32[1,96], index: 2, kind: input, shape index: {}]
  %s3 = inlined_call_operand.hbm [shape: bf16[2,4,8,8], index: 3, kind: output, shape index: {0}]
  %s4 = inlined_call_operand.hbm [shape: bf16[2,4,8,8], index: 4, kind: output, shape index: {1}]
  %s5 = inlined_call_operand.hbm [shape: bf16[2,4,8,8], index: 5, kind: output, shape index: {2}]
  %6 = xla_tuple %s3, %s4, %s5
  %s7 = sld [smem:[#allocation0]]
  $region69: #{tpu_custom_call.1} parent=0
    _
  %s9 = ssub.s32 1, %s7
  %s10 = scalar_select 0, %s9, %s7
  $region1: #{tpu_custom_call.1} parent=0
    #allocation2 [shape = 'u8[8192]{0}', space=vmem, size = 0x2000, scoped, tag = 'input window, operand 0']
    #allocation3 [shape = 's32[2]{0}', space=sflag, size = 0x8, scoped, tag = 'scoped memory for tpu_custom_call.1']
    #allocation4 [shape = 's32[2]{0}', space=sflag, size = 0x8, scoped, tag = 'scoped memory for tpu_custom_call.1']
    #allocation5 [shape = 'u8[8192]{0}', space=vmem, size = 0x2000, scoped, tag = 'input window, operand 1, single buffered']
    #allocation6 [shape = 's32[1]{0}', space=sflag, size = 0x4, scoped, tag = 'scoped memory for tpu_custom_call.1']
    #allocation7 [shape = 'u8[16384]{0}', space=vmem, size = 0x4000, scoped, tag = 'output window, operand 0']
    #allocation8 [shape = 'u8[16384]{0}', space=vmem, size = 0x4000, scoped, tag = 'output window, operand 1']
    #allocation9 [shape = 's32[2]{0}', space=sflag, size = 0x8, scoped, tag = 'scoped memory for tpu_custom_call.1']
    #allocation10 [shape = 'u8[16384]{0}', space=vmem, size = 0x4000, scoped, tag = 'output window, operand 2']
    %11 = vsyncpa [#allocation3], 0
    %s12 = scalar_lea.sflag [#allocation3], 1
    %13 = vsyncpa %s12, 0
    %14 = vsyncpa [#allocation6], 0
    %15 = vsyncpa [#allocation4], 0
    %s16 = scalar_lea.sflag [#allocation4], 1
    %17 = vsyncpa %s16, 0
    %18 = vsyncpa [#allocation9], 0
    %s19 = scalar_lea.sflag [#allocation9], 1
    %20 = vsyncpa %s19, 0
    loop: start=0, step=1, limit=4
    $region2: #{tpu_custom_call.1} parent=1 // loop_pre_header
      _
    $region3: #{tpu_custom_call.1} parent=1 // loop_header
      %s22 = sphi 0, %s26
      %p23 = scmp.ge.s32.totalorder %s22, 4
      %s29 = sphi 0, %s41
      %s30 = sphi 0, %s37
      %s31 = sphi 0, %s29
      %s32 = sphi 0, %s30
      %s33 = sphi 0, %s31
      %s34 = sphi 0, %s32
      %s46 = sphi 0, %s48
      %s49 = sphi 0, %s46
      %s50 = sphi 0, %s49
      %s66 = sphi 0, %s50
      %s70 = sphi 0, %s70
      %s72 = sphi 0, %s70
      %s73 = sphi 0, %s72
      %s87 = sphi 0, %s73
      %s91 = sphi 0, %s91
      %s93 = sphi 0, %s91
      %s94 = sphi 0, %s93
      %s108 = sphi 0, %s94
      %s116 = sphi 0, %s118
      %s119 = sphi 0, %s116
      %s120 = sphi 0, %s119
      %s136 = sphi 0, %s120
      %s144 = sphi 0, %s146
      %s147 = sphi 0, %s144
      %s148 = sphi 0, %s147
      %s164 = sphi 0, %s148
      %s172 = sphi 0, %s174
      %s175 = sphi 0, %s172
      %s176 = sphi 0, %s175
      %s192 = sphi 0, %s176
    $region4: #{tpu_custom_call.1} parent=1 // loop_header_branch
      %25 = sbr.rel (%p23) target = $region8
    $region5: #{tpu_custom_call.1} parent=1 // loop_body
      %s27 = ssub.s32 %s22, 1
      %s28 = ssub.s32 %s22, 2
      %s35 = sadd.s32 1, %s30
      %p36 = scmp.ge.s32.totalorder %s35, 1
      %s37 = scalar_select %p36, 0, %s35
      %s38 = sadd.s32 1, %s29
      %s39 = scalar_select %p36, %s38, %s29
      %p40 = scmp.ge.s32.totalorder %s39, 2
      %s41 = scalar_select %p40, 0, %s39
      %s42 = ssub.s32 %s29, %s41
      %s43 = ssub.s32 %s30, %s37
      %s44 = sor.u32 %s42, %s43
      %p45 = scmp.eq.s32.totalorder %s44, 0
      %s47 = sadd.s32 %s46, 1
      %s48 = scalar_select %p45, %s46, %s47
      %p51 = pneg %p45
      %p52 = scmp.eq.s32.totalorder %s22, 1
      %p53 = por %p51, %p52
      %p54 = scmp.ne.s32.totalorder %s46, %s49
      %p55 = scmp.eq.s32.totalorder %s22, 0
      %p56 = por %p54, %p55
      %p57 = scmp.ne.s32.totalorder %s46, %s49
      %p58 = scmp.eq.s32.totalorder %s27, 1
      %p59 = por %p57, %p58
      %p60 = scmp.ne.s32.totalorder %s49, %s50
      %p61 = scmp.eq.s32.totalorder %s27, 0
      %p62 = por %p60, %p61
      %p63 = scmp.ne.s32.totalorder %s49, %s50
      %p64 = scmp.eq.s32.totalorder %s28, 1
      %p65 = por %p63, %p64
      %p67 = scmp.ne.s32.totalorder %s50, %s66
      %p68 = scmp.eq.s32.totalorder %s28, 0
      %p69 = por %p67, %p68
      %s71 = sadd.s32 %s70, 1
      %p74 = scmp.eq.s32.totalorder %s22, 1
      %p75 = scmp.ne.s32.totalorder %s70, %s72
      %p76 = scmp.eq.s32.totalorder %s22, 0
      %p77 = por %p75, %p76
      %p78 = scmp.ne.s32.totalorder %s70, %s72
      %p79 = scmp.eq.s32.totalorder %s27, 1
      %p80 = por %p78, %p79
      %p81 = scmp.ne.s32.totalorder %s72, %s73
      %p82 = scmp.eq.s32.totalorder %s27, 0
      %p83 = por %p81, %p82
      %p84 = scmp.ne.s32.totalorder %s72, %s73
      %p85 = scmp.eq.s32.totalorder %s28, 1
      %p86 = por %p84, %p85
      %p88 = scmp.ne.s32.totalorder %s73, %s87
      %p89 = scmp.eq.s32.totalorder %s28, 0
      %p90 = por %p88, %p89
      %s92 = sadd.s32 %s91, 1
      %p95 = scmp.eq.s32.totalorder %s22, 1
      %p96 = scmp.ne.s32.totalorder %s91, %s93
      %p97 = scmp.eq.s32.totalorder %s22, 0
      %p98 = por %p96, %p97
      %p99 = scmp.ne.s32.totalorder %s91, %s93
      %p100 = scmp.eq.s32.totalorder %s27, 1
      %p101 = por %p99, %p100
      %p102 = scmp.ne.s32.totalorder %s93, %s94
      %p103 = scmp.eq.s32.totalorder %s27, 0
      %p104 = por %p102, %p103
      %p105 = scmp.ne.s32.totalorder %s93, %s94
      %p106 = scmp.eq.s32.totalorder %s28, 1
      %p107 = por %p105, %p106
      %p109 = scmp.ne.s32.totalorder %s94, %s108
      %p110 = scmp.eq.s32.totalorder %s28, 0
      %p111 = por %p109, %p110
      %s112 = ssub.s32 %s29, %s41
      %s113 = ssub.s32 %s30, %s37
      %s114 = sor.u32 %s112, %s113
      %p115 = scmp.eq.s32.totalorder %s114, 0
      %s117 = sadd.s32 %s116, 1
      %s118 = scalar_select %p115, %s116, %s117
      %p121 = pneg %p115
      %p122 = scmp.eq.s32.totalorder %s22, 1
      %p123 = por %p121, %p122
      %p124 = scmp.ne.s32.totalorder %s116, %s119
      %p125 = scmp.eq.s32.totalorder %s22, 0
      %p126 = por %p124, %p125
      %p127 = scmp.ne.s32.totalorder %s116, %s119
      %p128 = scmp.eq.s32.totalorder %s27, 1
      %p129 = por %p127, %p128
      %p130 = scmp.ne.s32.totalorder %s119, %s120
      %p131 = scmp.eq.s32.totalorder %s27, 0
      %p132 = por %p130, %p131
      %p133 = scmp.ne.s32.totalorder %s119, %s120
      %p134 = scmp.eq.s32.totalorder %s28, 1
      %p135 = por %p133, %p134
      %p137 = scmp.ne.s32.totalorder %s120, %s136
      %p138 = scmp.eq.s32.totalorder %s28, 0
      %p139 = por %p137, %p138
      %s140 = ssub.s32 %s29, %s41
      %s141 = ssub.s32 %s30, %s37
      %s142 = sor.u32 %s140, %s141
      %p143 = scmp.eq.s32.totalorder %s142, 0
      %s145 = sadd.s32 %s144, 1
      %s146 = scalar_select %p143, %s144, %s145
      %p149 = pneg %p143
      %p150 = scmp.eq.s32.totalorder %s22, 1
      %p151 = por %p149, %p150
      %p152 = scmp.ne.s32.totalorder %s144, %s147
      %p153 = scmp.eq.s32.totalorder %s22, 0
      %p154 = por %p152, %p153
      %p155 = scmp.ne.s32.totalorder %s144, %s147
      %p156 = scmp.eq.s32.totalorder %s27, 1
      %p157 = por %p155, %p156
      %p158 = scmp.ne.s32.totalorder %s147, %s148
      %p159 = scmp.eq.s32.totalorder %s27, 0
      %p160 = por %p158, %p159
      %p161 = scmp.ne.s32.totalorder %s147, %s148
      %p162 = scmp.eq.s32.totalorder %s28, 1
      %p163 = por %p161, %p162
      %p165 = scmp.ne.s32.totalorder %s148, %s164
      %p166 = scmp.eq.s32.totalorder %s28, 0
      %p167 = por %p165, %p166
      %s168 = ssub.s32 %s29, %s41
      %s169 = ssub.s32 %s30, %s37
      %s170 = sor.u32 %s168, %s169
      %p171 = scmp.eq.s32.totalorder %s170, 0
      %s173 = sadd.s32 %s172, 1
      %s174 = scalar_select %p171, %s172, %s173
      %p177 = pneg %p171
      %p178 = scmp.eq.s32.totalorder %s22, 1
      %p179 = por %p177, %p178
      %p180 = scmp.ne.s32.totalorder %s172, %s175
      %p181 = scmp.eq.s32.totalorder %s22, 0
      %p182 = por %p180, %p181
      %p183 = scmp.ne.s32.totalorder %s172, %s175
      %p184 = scmp.eq.s32.totalorder %s27, 1
      %p185 = por %p183, %p184
      %p186 = scmp.ne.s32.totalorder %s175, %s176
      %p187 = scmp.eq.s32.totalorder %s27, 0
      %p188 = por %p186, %p187
      %p189 = scmp.ne.s32.totalorder %s175, %s176
      %p190 = scmp.eq.s32.totalorder %s28, 1
      %p191 = por %p189, %p190
      %p193 = scmp.ne.s32.totalorder %s176, %s192
      %p194 = scmp.eq.s32.totalorder %s28, 0
      %p195 = por %p193, %p194
      %p196 = scmp.le.s32.totalorder 1, %s22
      %p197 = scmp.lt.s32.totalorder %s22, 3
      %p198 = pnand %p196, %p197
      %p199 = pneg %p198
      // Predicated region
      $region9: #{tpu_custom_call.1} parent=5 // pred_check
        _
      $region10: #{tpu_custom_call.1} parent=5 // pred_check_branch
        %201 = sbr.rel (%p198) target = $region12
      $region11: #{tpu_custom_call.1} parent=5 // pred_region
        %s202 = ssub.s32 %s22, 1
        // Predicated region
        $region13: #{tpu_custom_call.1} parent=11 // pred_check
          %p203 = pneg %p83
        $region14: #{tpu_custom_call.1} parent=11 // pred_check_branch
          %205 = sbr.rel (%p203) target = $region16
        $region15: #{tpu_custom_call.1} parent=11 // pred_region
          %207 = vsyncadd [#allocation6], 0
          %s208 = sshll.u32 %s1, 4
          %s209 = int_to_ptr.hbm [resolvable:$true] %s208
          %s210 = sshll.u32 [#allocation5], 4
          %s211 = int_to_ptr.vmem [resolvable:$true] %s210
          %216 = dma.hbm_to_vmem [thread:$0]  %s209, 256, %s211, [#allocation6], 64, 64, 4
        $region16: #{tpu_custom_call.1} parent=11 // pred_fallthru
          _
        // Predicated region
        $region17: #{tpu_custom_call.1} parent=11 // pred_check
          %p217 = pneg %p104
        $region18: #{tpu_custom_call.1} parent=11 // pred_check_branch
          %219 = sbr.rel (%p217) target = $region20
        $region19: #{tpu_custom_call.1} parent=11 // pred_region
          _
        $region20: #{tpu_custom_call.1} parent=11 // pred_fallthru
          _
      $region12: #{tpu_custom_call.1} parent=5 // pred_fallthru
        _
      %p220 = scmp.lt.s32.totalorder %s22, 2
      // Predicated region
      $region21: #{tpu_custom_call.1} parent=5 // pred_check
        %p221 = pneg %p220
      $region22: #{tpu_custom_call.1} parent=5 // pred_check_branch
        %223 = sbr.rel (%p221) target = $region24
      $region23: #{tpu_custom_call.1} parent=5 // pred_region
        // Predicated region
        $region25: #{tpu_custom_call.1} parent=23 // pred_check
          %p224 = pneg %p56
        $region26: #{tpu_custom_call.1} parent=23 // pred_check_branch
          %226 = sbr.rel (%p224) target = $region28
        $region27: #{tpu_custom_call.1} parent=23 // pred_region
          %s227 = sand.u32 %s46, 1
          %s228 = scalar_lea.sflag [#allocation3], %s227
          %s229 = sand.u32 %s46, 1
          %s230 = smul.addr %s229, 8
          %s231 = scalar_lea.vmem [#allocation2], %s230
          %233 = vsyncadd %s228, 0
          %s234 = sadd.s32 %s30, %s29
          %s235 = smul.addr %s234, 8
          %s236 = scalar_lea.hbm %s0, %s235
          %s238 = sshll.u32 %s236, 4
          %s239 = int_to_ptr.hbm [resolvable:$true] %s238
          %s240 = sshll.u32 %s231, 4
          %s241 = int_to_ptr.vmem [resolvable:$true] %s240
          %243 = dma.hbm_to_vmem [thread:$0]  %s239, 128, %s241, %s228
        $region28: #{tpu_custom_call.1} parent=23 // pred_fallthru
          _
      $region24: #{tpu_custom_call.1} parent=5 // pred_fallthru
        _
      %p244 = scmp.le.s32.totalorder 1, %s22
      %p245 = scmp.lt.s32.totalorder %s22, 3
      %p246 = pnand %p244, %p245
      %p247 = pneg %p246
      // Predicated region
      $region29: #{tpu_custom_call.1} parent=5 // pred_check
        _
      $region30: #{tpu_custom_call.1} parent=5 // pred_check_branch
        %249 = sbr.rel (%p246) target = $region32
      $region31: #{tpu_custom_call.1} parent=5 // pred_region
        %s250 = ssub.s32 %s22, 1
        %s251 = sand.u32 %s49, 1
        %s252 = scalar_lea.sflag [#allocation3], %s251
        %s253 = sand.u32 %s49, 1
        %s254 = smul.addr %s253, 8
        %s255 = scalar_lea.vmem [#allocation2], %s254
        // Predicated region
        $region33: #{tpu_custom_call.1} parent=31 // pred_check
          %p256 = pneg %p62
        $region34: #{tpu_custom_call.1} parent=31 // pred_check_branch
          %258 = sbr.rel (%p256) target = $region36
        $region35: #{tpu_custom_call.1} parent=31 // pred_region
          %260 = dma.done %s252, 128
        $region36: #{tpu_custom_call.1} parent=31 // pred_fallthru
          _
        // Predicated region
        $region37: #{tpu_custom_call.1} parent=31 // pred_check
          %p261 = pneg %p83
        $region38: #{tpu_custom_call.1} parent=31 // pred_check_branch
          %263 = sbr.rel (%p261) target = $region40
        $region39: #{tpu_custom_call.1} parent=31 // pred_region
          %265 = dma.done [#allocation6], 256
        $region40: #{tpu_custom_call.1} parent=31 // pred_fallthru
          _
        %s266 = sand.u32 %s49, 1
        %s267 = scalar_lea.sflag [#allocation3], %s266
        %s268 = sand.u32 %s49, 1
        %s269 = smul.addr %s268, 8
        %s270 = scalar_lea.vmem [#allocation2], %s269
        %p271 = pneg %p62
        %p272 = pneg %p59
        %p273 = pneg %p83
        %p274 = pneg %p80
        %p275 = pneg %p104
        %p276 = pneg %p101
        %p277 = pneg %p132
        %p278 = pneg %p129
        %s279 = sand.u32 %s119, 1
        %s280 = scalar_lea.sflag [#allocation4], %s279
        %s281 = sand.u32 %s119, 1
        %s282 = smul.addr %s281, 16
        %s283 = scalar_lea.vmem [#allocation7], %s282
        %p284 = pneg %p160
        %p285 = pneg %p157
        %s286 = sand.u32 %s27, 1
        %s287 = scalar_lea.sflag [#allocation9], %s286
        %s288 = sand.u32 %s147, 1
        %s289 = smul.addr %s288, 16
        %s290 = scalar_lea.vmem [#allocation8], %s289
        %p291 = pneg %p188
        %p292 = pneg %p185
        %s293 = sand.u32 %s27, 1
        %s294 = scalar_lea.sflag [#allocation9], %s293
        %s295 = sand.u32 %s175, 1
        %s296 = smul.addr %s295, 16
        %s297 = scalar_lea.vmem [#allocation10], %s296
        %v299 = vld [vmem:[%s255] sm:$0xff]
        %v300 = vpack.c.bf16 %v299, %v299
        %v301 = vld [vmem:[#allocation5] sm:$0xf]
        %v302 = vld [vmem:[#allocation5 + $0x4] sm:$0xf]
        %v303 = vld [vmem:[#allocation5 + $0x8] sm:$0xf]
        %v304 = vld [vmem:[#allocation5 + $0xc] sm:$0xf]
        %v305 = vld [vmem:[%s2] sm:$0x1]
        %v307 = vperm.slane %v305, 0
        %v313 = vunpack.c.l.b16 %v301
        %v314 = vunpack.c.l.b16 %v302
        %v315 = vunpack.c.l.b16 %v303
        %v316 = vunpack.c.l.b16 %v304
        %v317 = vpack.c.b16 %v314, %v313
        %v318 = vpack.c.b16 %v316, %v315
        %vm321 = vcmask 261120
        %v323 = vsel %vm321, %v300, 0
        %325 = vmatpush.bf16.msra.mxu0 0
        %326 = vmatpush.bf16.msra.mxu0 0
        %327 = vmatpush.bf16.msra.mxu0 0
        %328 = vmatpush.bf16.msra.mxu0 0
        %329 = vmatpush.bf16.msra.mxu0 0
        %330 = vmatpush.bf16.msra.mxu0 0
        %331 = vmatpush.bf16.msra.mxu0 %v318
        %332 = vmatpush.bf16.msra.mxu0 %v317
        %333 = vmatmul.bf16.gmra.mxu0 %v323
        %v334 = vpop.f32.mrf.mxu0
        %v335 = vadd.f32 %v307, %v334
        %v336 = vpop.f32.mrf.mxu0
        %337 = vdwg.mxu0
        %v338 = vmul.f32 %v335, 0.35355338
        %v339 = vpack.c.bf16 %v338, %v338
        %vm340 = vcmask 60416
        %341 = vst.msk [vmem:[%s283] sm:$0xf] %vm340, %v339
        %v342 = vpack.c.bf16 %v335, %v335
        %344 = vrot.lane.b32.xlu0 %v342, 96
        %v345 = vpop.permute.xlu0 %344
        %347 = vst.msk [vmem:[%s290] sm:$0xf] %vm340, %v345
        %348 = vrot.lane.b32.xlu0 %v342, 64
        %v349 = vpop.permute.xlu0 %348
        %351 = vst.msk [vmem:[%s297] sm:$0xf] %vm340, %v349
        %353 = vrot.lane.b32.xlu0 %v339, 120
        %v354 = vpop.permute.xlu0 %353
        %s356 = scalar_lea.vmem %s283, 4 [#allocation7]
        %357 = vst.msk [vmem:[%s356] sm:$0xf] %vm340, %v354
        %358 = vrot.lane.b32.xlu0 %v342, 88
        %v359 = vpop.permute.xlu0 %358
        %s361 = scalar_lea.vmem %s290, 4 [#allocation8]
        %362 = vst.msk [vmem:[%s361] sm:$0xf] %vm340, %v359
        %363 = vrot.lane.b32.xlu0 %v342, 56
        %v364 = vpop.permute.xlu0 %363
        %s366 = scalar_lea.vmem %s297, 4 [#allocation10]
        %367 = vst.msk [vmem:[%s366] sm:$0xf] %vm340, %v364
        %368 = vrot.lane.b32.xlu0 %v339, 112
        %v369 = vpop.permute.xlu0 %368
        %s371 = scalar_lea.vmem %s283, 8 [#allocation7]
        %372 = vst.msk [vmem:[%s371] sm:$0xf] %vm340, %v369
        %373 = vrot.lane.b32.xlu0 %v342, 80
        %v374 = vpop.permute.xlu0 %373
        %s376 = scalar_lea.vmem %s290, 8 [#allocation8]
        %377 = vst.msk [vmem:[%s376] sm:$0xf] %vm340, %v374
        %378 = vrot.lane.b32.xlu0 %v342, 48
        %v379 = vpop.permute.xlu0 %378
        %s381 = scalar_lea.vmem %s297, 8 [#allocation10]
        %382 = vst.msk [vmem:[%s381] sm:$0xf] %vm340, %v379
        %383 = vrot.lane.b32.xlu0 %v339, 104
        %v384 = vpop.permute.xlu0 %383
        %s386 = scalar_lea.vmem %s283, 12 [#allocation7]
        %387 = vst.msk [vmem:[%s386] sm:$0xf] %vm340, %v384
        %388 = vrot.lane.b32.xlu0 %v342, 72
        %v389 = vpop.permute.xlu0 %388
        %s391 = scalar_lea.vmem %s290, 12 [#allocation8]
        %392 = vst.msk [vmem:[%s391] sm:$0xf] %vm340, %v389
        %393 = vrot.lane.b32.xlu0 %v342, 40
        %v394 = vpop.permute.xlu0 %393
        %s396 = scalar_lea.vmem %s297, 12 [#allocation10]
        %397 = vst.msk [vmem:[%s396] sm:$0xf] %vm340, %v394
        %s398 = sand.u32 %s119, 1
        %s399 = scalar_lea.sflag [#allocation4], %s398
        %s400 = sand.u32 %s119, 1
        %s401 = smul.addr %s400, 16
        %s402 = scalar_lea.vmem [#allocation7], %s401
        %s403 = sand.u32 %s27, 1
        %s404 = scalar_lea.sflag [#allocation9], %s403
        %s405 = sand.u32 %s147, 1
        %s406 = smul.addr %s405, 16
        %s407 = scalar_lea.vmem [#allocation8], %s406
        %s408 = sand.u32 %s27, 1
        %s409 = scalar_lea.sflag [#allocation9], %s408
        %s410 = sand.u32 %s175, 1
        %s411 = smul.addr %s410, 16
        %s412 = scalar_lea.vmem [#allocation10], %s411
        // Predicated region
        $region41: #{tpu_custom_call.1} parent=31 // pred_check
          %p413 = pneg %p129
        $region42: #{tpu_custom_call.1} parent=31 // pred_check_branch
          %415 = sbr.rel (%p413) target = $region44
        $region43: #{tpu_custom_call.1} parent=31 // pred_region
          %417 = vsyncadd %s399, 0
          %s418 = smul.addr %s31, 4
          %s419 = sadd.s32 %s32, %s418
          %s420 = smul.addr %s419, 4
          %s421 = scalar_lea.hbm %s3, %s420
          %s422 = sshll.u32 %s402, 4
          %s423 = int_to_ptr.vmem [resolvable:$true] %s422
          %s424 = sshll.u32 %s421, 4
          %s425 = int_to_ptr.hbm [resolvable:$true] %s424
          %430 = dma.vmem_to_hbm [thread:$0]  %s423, 256, %s425, %s399, 64, 64, 4
        $region44: #{tpu_custom_call.1} parent=31 // pred_fallthru
          _
        // Predicated region
        $region45: #{tpu_custom_call.1} parent=31 // pred_check
          %p431 = pneg %p157
        $region46: #{tpu_custom_call.1} parent=31 // pred_check_branch
          %433 = sbr.rel (%p431) target = $region48
        $region47: #{tpu_custom_call.1} parent=31 // pred_region
          %435 = vsyncadd %s404, 0
          %s436 = smul.addr %s31, 4
          %s437 = sadd.s32 %s32, %s436
          %s438 = smul.addr %s437, 4
          %s439 = scalar_lea.hbm %s4, %s438
          %s440 = sshll.u32 %s407, 4
          %s441 = int_to_ptr.vmem [resolvable:$true] %s440
          %s442 = sshll.u32 %s439, 4
          %s443 = int_to_ptr.hbm [resolvable:$true] %s442
          %448 = dma.vmem_to_hbm [thread:$0]  %s441, 256, %s443, %s404, 64, 64, 4
        $region48: #{tpu_custom_call.1} parent=31 // pred_fallthru
          _
        // Predicated region
        $region49: #{tpu_custom_call.1} parent=31 // pred_check
          %p449 = pneg %p185
        $region50: #{tpu_custom_call.1} parent=31 // pred_check_branch
          %451 = sbr.rel (%p449) target = $region52
        $region51: #{tpu_custom_call.1} parent=31 // pred_region
          %453 = vsyncadd %s409, 0
          %s454 = smul.addr %s31, 4
          %s455 = sadd.s32 %s32, %s454
          %s456 = smul.addr %s455, 4
          %s457 = scalar_lea.hbm %s5, %s456
          %s458 = sshll.u32 %s412, 4
          %s459 = int_to_ptr.vmem [resolvable:$true] %s458
          %s460 = sshll.u32 %s457, 4
          %s461 = int_to_ptr.hbm [resolvable:$true] %s460
          %466 = dma.vmem_to_hbm [thread:$0]  %s459, 256, %s461, %s409, 64, 64, 4
        $region52: #{tpu_custom_call.1} parent=31 // pred_fallthru
          _
      $region32: #{tpu_custom_call.1} parent=5 // pred_fallthru
        _
      %p467 = scmp.le.s32.totalorder 2, %s22
      // Predicated region
      $region53: #{tpu_custom_call.1} parent=5 // pred_check
        %p468 = pneg %p467
      $region54: #{tpu_custom_call.1} parent=5 // pred_check_branch
        %470 = sbr.rel (%p468) target = $region56
      $region55: #{tpu_custom_call.1} parent=5 // pred_region
        %s471 = ssub.s32 %s22, 2
        // Predicated region
        $region57: #{tpu_custom_call.1} parent=55 // pred_check
          %p472 = pneg %p135
        $region58: #{tpu_custom_call.1} parent=55 // pred_check_branch
          %474 = sbr.rel (%p472) target = $region60
        $region59: #{tpu_custom_call.1} parent=55 // pred_region
          %s475 = sand.u32 %s120, 1
          %s476 = scalar_lea.sflag [#allocation4], %s475
          %s477 = sand.u32 %s120, 1
          %s478 = smul.addr %s477, 16
          %s479 = scalar_lea.vmem [#allocation7], %s478
          %481 = dma.done %s476, 256
        $region60: #{tpu_custom_call.1} parent=55 // pred_fallthru
          _
        // Predicated region
        $region61: #{tpu_custom_call.1} parent=55 // pred_check
          %p482 = pneg %p163
        $region62: #{tpu_custom_call.1} parent=55 // pred_check_branch
          %484 = sbr.rel (%p482) target = $region64
        $region63: #{tpu_custom_call.1} parent=55 // pred_region
          %s485 = sand.u32 %s28, 1
          %s486 = scalar_lea.sflag [#allocation9], %s485
          %s487 = sand.u32 %s148, 1
          %s488 = smul.addr %s487, 16
          %s489 = scalar_lea.vmem [#allocation8], %s488
          %491 = dma.done %s486, 256
        $region64: #{tpu_custom_call.1} parent=55 // pred_fallthru
          _
        // Predicated region
        $region65: #{tpu_custom_call.1} parent=55 // pred_check
          %p492 = pneg %p191
        $region66: #{tpu_custom_call.1} parent=55 // pred_check_branch
          %494 = sbr.rel (%p492) target = $region68
        $region67: #{tpu_custom_call.1} parent=55 // pred_region
          %s495 = sand.u32 %s28, 1
          %s496 = scalar_lea.sflag [#allocation9], %s495
          %s497 = sand.u32 %s176, 1
          %s498 = smul.addr %s497, 16
          %s499 = scalar_lea.vmem [#allocation10], %s498
          %501 = dma.done %s496, 256
        $region68: #{tpu_custom_call.1} parent=55 // pred_fallthru
          _
      $region56: #{tpu_custom_call.1} parent=5 // pred_fallthru
        _
    $region6: #{tpu_custom_call.1} parent=1 // loop_footer
      %s26 = sadd.s32 1, %s22
    $region7: #{tpu_custom_call.1} parent=1 // loop_footer_branch
      %21 = sbr.rel target = $region3
    $region8: #{tpu_custom_call.1} parent=1 // loop_exit
      _
    %502 = vsyncpa [#allocation3], 1
    %s503 = scalar_lea.sflag [#allocation3], 1
    %504 = vsyncpa %s503, 1
    %505 = vsyncpa [#allocation6], 1
    %506 = vsyncpa [#allocation4], 1
    %s507 = scalar_lea.sflag [#allocation4], 1
    %508 = vsyncpa %s507, 1
    %509 = vsyncpa [#allocation9], 1
    %s510 = scalar_lea.sflag [#allocation9], 1
    %511 = vsyncpa %s510, 1

</llo_original>
